<compile_context>
chip_gen: v7x
topology: tpu7x:2x2x1
jax: 0.10.0
libtpu: 0.0.40
codegen_flags: <defaults>
</compile_context>

<pallas_src>
import numpy as np
import jax
import jax.numpy as jnp
from jax.experimental import pallas as pl
from jax.experimental.pallas import tpu as pltpu

_INV_SQRT2 = 0.7071067811865476


# ----------------------------- Pallas kernel -----------------------------

def _haar_dwt_kernel(x_ref, gw_ref, o_ref):
    # x_ref : (ct, ht, 2W)    paired rows on the lane axis: [row 2i | row 2i+1]
    # gw_ref: (W, W)          width analysis matrix: cols [0,W/2)=low-pass, [W/2,W)=high-pass
    # o_ref : (4, ct, ht, W/2) bands in output order: 0=(Wlo,Hhi) 1=(Whi,Hlo) 2=(Whi,Hhi) 3=LL
    ct, ht, w2 = x_ref.shape
    W = w2 // 2
    Wh = W // 2

    x = x_ref[...].astype(jnp.float32)
    x_even = x[:, :, :W]                       # rows 2i
    x_odd = x[:, :, W:]                        # rows 2i+1
    s = jnp.float32(_INV_SQRT2)
    row_lo = (x_even + x_odd) * s              # low-pass along H   (ct, ht, W)
    row_hi = (x_even - x_odd) * s              # high-pass along H

    gw = gw_ref[...].astype(jnp.float32)
    y_lo = jnp.dot(row_lo.reshape(ct * ht, W), gw, preferred_element_type=jnp.float32)
    y_hi = jnp.dot(row_hi.reshape(ct * ht, W), gw, preferred_element_type=jnp.float32)

    ll = y_lo[:, :Wh].reshape(ct, ht, Wh)      # (W low , H low )
    b1 = y_lo[:, Wh:].reshape(ct, ht, Wh)      # (W high, H low )
    b0 = y_hi[:, :Wh].reshape(ct, ht, Wh)      # (W low , H high)
    b2 = y_hi[:, Wh:].reshape(ct, ht, Wh)      # (W high, H high)

    o_ref[0] = b0.astype(o_ref.dtype)
    o_ref[1] = b1.astype(o_ref.dtype)
    o_ref[2] = b2.astype(o_ref.dtype)
    o_ref[3] = ll.astype(o_ref.dtype)


# ----------------------------- wrapper -----------------------------

def _width_analysis_matrix(W):
    """(W, W) Haar analysis matrix; left half = dec_lo branch, right half = dec_hi branch."""
    s = np.float32(_INV_SQRT2)
    Wh = W // 2
    g = np.zeros((W, W), np.float32)
    k = np.arange(Wh)
    g[2 * k, k] = s
    g[2 * k + 1, k] = s            # low-pass  -> columns [0, W/2)
    g[2 * k, Wh + k] = s
    g[2 * k + 1, Wh + k] = -s      # high-pass -> columns [W/2, W)
    return jnp.asarray(g)


def _choose_tiles(C, Hh, w2, itemsize, budget_bytes=2 << 20):
    """Pick (channel tile, half-row tile) so one input/output block pair stays ~<= budget."""
    row_bytes = w2 * itemsize
    ht = Hh
    if Hh * row_bytes > budget_bytes:
        cand = max(8, min(Hh, budget_bytes // row_bytes) // 8 * 8)
        while cand > 8 and Hh % cand != 0:
            cand -= 8
        if cand >= 8 and Hh % cand == 0:
            ht = cand
        # else fall back to full height (correctness over the soft VMEM target)
    ct = 1
    for c in range(C, 0, -1):
        if C % c == 0 and c * ht * row_bytes <= budget_bytes:
            ct = c
            break
    return ct, ht


def wave_down_all(x):
    """Wave_Down_all.forward: Haar DWT (J=1); output = concat([yh0, yh1, yh2, yl], channel)."""
    B, C, H, W = x.shape
    assert H % 2 == 0 and W % 2 == 0, "Haar J=1 DWT expects even spatial dims"
    # TODO(synk): odd H/W would need pytorch_wavelets' zero-padding path; not implemented.
    # TODO(synk): for very large W the (W,W) analysis matmul should become a haloed stencil.
    Hh, Wh = H // 2, W // 2

    x_pairs = x.reshape(B, C, Hh, 2 * W)       # free reshape: row i = [row 2i | row 2i+1]
    gw = _width_analysis_matrix(W)

    ct, ht = _choose_tiles(C, Hh, 2 * W, x.dtype.itemsize)
    grid = (B, C // ct, Hh // ht)

    out = pl.pallas_call(
        _haar_dwt_kernel,
        out_shape=jax.ShapeDtypeStruct((B, 4, C, Hh, Wh), x.dtype),
        grid=grid,
        in_specs=[
            pl.BlockSpec((None, ct, ht, 2 * W), lambda b, c, r: (b, c, r, 0)),
            pl.BlockSpec((W, W), lambda b, c, r: (0, 0)),
        ],
        out_specs=pl.BlockSpec((None, 4, ct, ht, Wh), lambda b, c, r: (b, 0, c, r, 0)),
        compiler_params=pltpu.CompilerParams(
            dimension_semantics=("parallel", "parallel", "parallel")),
    )(x_pairs, gw)

    # (B, 4, C, Hh, Wh) -> (B, 4C, Hh, Wh): free merge; channel order = [band0, band1, band2, LL]
    return out.reshape(B, 4 * C, Hh, Wh)


# ----------------------------- pure-JAX reference (for the self-check) -----------------------------

def wave_down_all_ref(x):
    a = x[:, :, 0::2, 0::2]
    b = x[:, :, 0::2, 1::2]
    c = x[:, :, 1::2, 0::2]
    d = x[:, :, 1::2, 1::2]
    band0 = (a + b - c - d) * 0.5
    band1 = (a - b + c - d) * 0.5
    band2 = (a - b - c + d) * 0.5
    ll = (a + b + c + d) * 0.5
    return jnp.concatenate([band0, band1, band2, ll], axis=1)


# ----------------------------- demo -----------------------------

if __name__ == "__main__":
    key = jax.random.PRNGKey(0)
    B, C, H, W = 2, 4, 16, 16
    x = jax.random.normal(key, (B, C, H, W), dtype=jnp.float32)

    out = jax.block_until_ready(jax.jit(wave_down_all)(x))
    ref = wave_down_all_ref(x)

    assert out.shape == (B, 4 * C, H // 2, W // 2)
    assert bool(jnp.all(jnp.isfinite(out)))
    assert bool(jnp.allclose(out, ref, atol=1e-5, rtol=1e-5)), \
        float(jnp.max(jnp.abs(out - ref)))
    print("KERNEL_OK")
</pallas_src>

<mosaic_0001>
module attributes {stable_mosaic.version = 11 : i64} {
  func.func @_haar_dwt_kernel(%arg0: i32, %arg1: i32, %arg2: i32, %arg3: memref<1x4x8x32xf32, #tpu.memory_space<vmem>>, %arg4: memref<16x16xf32, #tpu.memory_space<vmem>>, %arg5: memref<1x4x4x8x8xf32, #tpu.memory_space<vmem>>) attributes {dimension_semantics = [#tpu.dimension_semantics<parallel>, #tpu.dimension_semantics<parallel>, #tpu.dimension_semantics<parallel>], iteration_bounds = array<i64: 2, 1, 1>, scalar_prefetch = 0 : i64, scratch_operands = 0 : i64, tpu.core_type = #tpu.core_type<tc>, window_params = [{transform_indices = @transform_0, window_bounds = array<i64: 1, 4, 8, 32>}, {pipeline_mode = #tpu.pipeline_mode<synchronous>, transform_indices = @transform_1, window_bounds = array<i64: 16, 16>}, {transform_indices = @transform_2, window_bounds = array<i64: 1, 4, 4, 8, 8>}]} {
    %c0 = arith.constant 0 : index
    %c0_0 = arith.constant 0 : index
    %c0_1 = arith.constant 0 : index
    %c0_2 = arith.constant 0 : index
    %0 = vector.load %arg3[%c0, %c0_0, %c0_1, %c0_2] : memref<1x4x8x32xf32, #tpu.memory_space<vmem>>, vector<1x4x8x32xf32>
    %1 = vector.shape_cast %0 : vector<1x4x8x32xf32> to vector<4x8x32xf32>
    %2 = vector.extract_strided_slice %1 {offsets = [0, 0, 0], sizes = [4, 8, 16], strides = [1, 1, 1]} : vector<4x8x32xf32> to vector<4x8x16xf32>
    %3 = vector.extract_strided_slice %1 {offsets = [0, 0, 16], sizes = [4, 8, 16], strides = [1, 1, 1]} : vector<4x8x32xf32> to vector<4x8x16xf32>
    %4 = arith.addf %2, %3 : vector<4x8x16xf32>
    %cst = arith.constant 0.707106769 : f32
    %5 = vector.broadcast %cst : f32 to vector<4x8x16xf32>
    %6 = arith.mulf %4, %5 : vector<4x8x16xf32>
    %7 = arith.subf %2, %3 : vector<4x8x16xf32>
    %cst_3 = arith.constant 0.707106769 : f32
    %8 = vector.broadcast %cst_3 : f32 to vector<4x8x16xf32>
    %9 = arith.mulf %7, %8 : vector<4x8x16xf32>
    %c0_4 = arith.constant 0 : index
    %c0_5 = arith.constant 0 : index
    %10 = vector.load %arg4[%c0_4, %c0_5] : memref<16x16xf32, #tpu.memory_space<vmem>>, vector<16x16xf32>
    %11 = vector.shape_cast %6 : vector<4x8x16xf32> to vector<32x16xf32>
    %cst_6 = arith.constant dense<0.000000e+00> : vector<32x16xf32>
    %12 = tpu.matmul %11, %10, %cst_6 {dimension_numbers = #tpu.dot_dimension_numbers<[1], [0], [0], [1], [0, 0, 1, 1], [], []>} : vector<32x16xf32>, vector<16x16xf32>, vector<32x16xf32> -> vector<32x16xf32>
    %13 = vector.shape_cast %9 : vector<4x8x16xf32> to vector<32x16xf32>
    %cst_7 = arith.constant dense<0.000000e+00> : vector<32x16xf32>
    %14 = tpu.matmul %13, %10, %cst_7 {dimension_numbers = #tpu.dot_dimension_numbers<[1], [0], [0], [1], [0, 0, 1, 1], [], []>} : vector<32x16xf32>, vector<16x16xf32>, vector<32x16xf32> -> vector<32x16xf32>
    %15 = vector.extract_strided_slice %12 {offsets = [0, 0], sizes = [32, 8], strides = [1, 1]} : vector<32x16xf32> to vector<32x8xf32>
    %16 = vector.shape_cast %15 : vector<32x8xf32> to vector<4x8x8xf32>
    %17 = vector.extract_strided_slice %12 {offsets = [0, 8], sizes = [32, 8], strides = [1, 1]} : vector<32x16xf32> to vector<32x8xf32>
    %18 = vector.shape_cast %17 : vector<32x8xf32> to vector<4x8x8xf32>
    %19 = vector.extract_strided_slice %14 {offsets = [0, 0], sizes = [32, 8], strides = [1, 1]} : vector<32x16xf32> to vector<32x8xf32>
    %20 = vector.shape_cast %19 : vector<32x8xf32> to vector<4x8x8xf32>
    %21 = vector.extract_strided_slice %14 {offsets = [0, 8], sizes = [32, 8], strides = [1, 1]} : vector<32x16xf32> to vector<32x8xf32>
    %22 = vector.shape_cast %21 : vector<32x8xf32> to vector<4x8x8xf32>
    %c0_8 = arith.constant 0 : index
    %c0_9 = arith.constant 0 : index
    %c0_10 = arith.constant 0 : index
    %c0_11 = arith.constant 0 : index
    %c0_12 = arith.constant 0 : index
    %23 = vector.load %arg5[%c0_8, %c0_9, %c0_10, %c0_11, %c0_12] : memref<1x4x4x8x8xf32, #tpu.memory_space<vmem>>, vector<1x1x4x8x8xf32>
    %24 = vector.shape_cast %23 : vector<1x1x4x8x8xf32> to vector<4x8x8xf32>
    %25 = vector.shape_cast %20 : vector<4x8x8xf32> to vector<1x1x4x8x8xf32>
    tpu.vector_store %arg5[%c0_8, %c0_9, %c0_10, %c0_11, %c0_12], %25 {strides = array<i32>} : memref<1x4x4x8x8xf32, #tpu.memory_space<vmem>>, vector<1x1x4x8x8xf32>,
    %c0_13 = arith.constant 0 : index
    %c1 = arith.constant 1 : index
    %c0_14 = arith.constant 0 : index
    %c0_15 = arith.constant 0 : index
    %c0_16 = arith.constant 0 : index
    %26 = vector.load %arg5[%c0_13, %c1, %c0_14, %c0_15, %c0_16] : memref<1x4x4x8x8xf32, #tpu.memory_space<vmem>>, vector<1x1x4x8x8xf32>
    %27 = vector.shape_cast %26 : vector<1x1x4x8x8xf32> to vector<4x8x8xf32>
    %28 = vector.shape_cast %18 : vector<4x8x8xf32> to vector<1x1x4x8x8xf32>
    tpu.vector_store %arg5[%c0_13, %c1, %c0_14, %c0_15, %c0_16], %28 {strides = array<i32>} : memref<1x4x4x8x8xf32, #tpu.memory_space<vmem>>, vector<1x1x4x8x8xf32>,
    %c0_17 = arith.constant 0 : index
    %c2 = arith.constant 2 : index
    %c0_18 = arith.constant 0 : index
    %c0_19 = arith.constant 0 : index
    %c0_20 = arith.constant 0 : index
    %29 = vector.load %arg5[%c0_17, %c2, %c0_18, %c0_19, %c0_20] : memref<1x4x4x8x8xf32, #tpu.memory_space<vmem>>, vector<1x1x4x8x8xf32>
    %30 = vector.shape_cast %29 : vector<1x1x4x8x8xf32> to vector<4x8x8xf32>
    %31 = vector.shape_cast %22 : vector<4x8x8xf32> to vector<1x1x4x8x8xf32>
    tpu.vector_store %arg5[%c0_17, %c2, %c0_18, %c0_19, %c0_20], %31 {strides = array<i32>} : memref<1x4x4x8x8xf32, #tpu.memory_space<vmem>>, vector<1x1x4x8x8xf32>,
    %c0_21 = arith.constant 0 : index
    %c3 = arith.constant 3 : index
    %c0_22 = arith.constant 0 : index
    %c0_23 = arith.constant 0 : index
    %c0_24 = arith.constant 0 : index
    %32 = vector.load %arg5[%c0_21, %c3, %c0_22, %c0_23, %c0_24] : memref<1x4x4x8x8xf32, #tpu.memory_space<vmem>>, vector<1x1x4x8x8xf32>
    %33 = vector.shape_cast %32 : vector<1x1x4x8x8xf32> to vector<4x8x8xf32>
    %34 = vector.shape_cast %16 : vector<4x8x8xf32> to vector<1x1x4x8x8xf32>
    tpu.vector_store %arg5[%c0_21, %c3, %c0_22, %c0_23, %c0_24], %34 {strides = array<i32>} : memref<1x4x4x8x8xf32, #tpu.memory_space<vmem>>, vector<1x1x4x8x8xf32>,
    return
  }
  func.func @transform_0(%arg0: i32, %arg1: i32, %arg2: i32) -> (i32, i32, i32, i32) {
    %c0_i32 = arith.constant 0 : i32
    %c0_i32_0 = arith.constant 0 : i32
    return %arg0, %arg1, %arg2, %c0_i32 : i32, i32, i32, i32
  }
  func.func @transform_1(%arg0: i32, %arg1: i32, %arg2: i32) -> (i32, i32) {
    %c0_i32 = arith.constant 0 : i32
    %c0_i32_0 = arith.constant 0 : i32
    %c0_i32_1 = arith.constant 0 : i32
    return %c0_i32, %c0_i32_0 : i32, i32
  }
  func.func @transform_2(%arg0: i32, %arg1: i32, %arg2: i32) -> (i32, i32, i32, i32, i32) {
    %c0_i32 = arith.constant 0 : i32
    %c0_i32_0 = arith.constant 0 : i32
    %c0_i32_1 = arith.constant 0 : i32
    return %arg0, %c0_i32, %arg1, %arg2, %c0_i32_0 : i32, i32, i32, i32, i32
  }
}

</mosaic_0001>

<llo_original>
// kernel: wave_down_all.1
$region0: #{wave_down_all.1}
  #allocation0 [shape = 'u32[]', space=smem, size = 0x4, offset = 0x4, fixed_abs, tag = 'smem constant byte address 0x4 - core index']
  #allocation1 [shape = 'u32[144,128]{1,0:T(1,128)}', space=vmem, size = 0x12000, scoped, tag = 'internal scratch']
  %s0 = inlined_call_operand.vmem [shape: f32[2,4,8,32], index: 0, kind: input, shape index: {}]
  %s1 = inlined_call_operand.vmem [shape: f32[16,16], index: 1, kind: input, shape index: {}]
  %s2 = inlined_call_operand.vmem [shape: f32[2,4,4,8,8], index: 2, kind: output, shape index: {}]
  %s3 = sld [smem:[#allocation0]]
  $region41: #{wave_down_all.1} parent=0
    _
  %s5 = ssub.s32 1, %s3
  %s6 = scalar_select 0, %s5, %s3
  loop: start=0, step=1, limit=4
  $region2: #{wave_down_all.1} parent=0 // loop_pre_header
    _
  $region3: #{wave_down_all.1} parent=0 // loop_header
    %s8 = sphi 0, %s12
    %p9 = scmp.ge.s32.totalorder %s8, 4
    %s15 = sphi 0, %s34
    %s16 = sphi 0, %s30
    %s17 = sphi 0, %s26
    %s18 = sphi 0, %s15
    %s19 = sphi 0, %s16
    %s20 = sphi 0, %s17
    %s21 = sphi 0, %s18
    %s22 = sphi 0, %s19
    %s23 = sphi 0, %s20
    %s41 = sphi 0, %s43
    %s44 = sphi 0, %s41
    %s45 = sphi 0, %s44
    %s61 = sphi 0, %s45
    %s65 = sphi 0, %s65
    %s67 = sphi 0, %s65
    %s68 = sphi 0, %s67
    %s82 = sphi 0, %s68
    %s92 = sphi 0, %s94
    %s95 = sphi 0, %s92
    %s96 = sphi 0, %s95
    %s112 = sphi 0, %s96
  $region4: #{wave_down_all.1} parent=0 // loop_header_branch
    %11 = sbr.rel (%p9) target = $region8
  $region5: #{wave_down_all.1} parent=0 // loop_body
    %s13 = ssub.s32 %s8, 1
    %s14 = ssub.s32 %s8, 2
    %s24 = sadd.s32 1, %s17
    %p25 = scmp.ge.s32.totalorder %s24, 1
    %s26 = scalar_select %p25, 0, %s24
    %s27 = sadd.s32 1, %s16
    %s28 = scalar_select %p25, %s27, %s16
    %p29 = scmp.ge.s32.totalorder %s28, 1
    %s30 = scalar_select %p29, 0, %s28
    %s31 = sadd.s32 1, %s15
    %s32 = scalar_select %p29, %s31, %s15
    %p33 = scmp.ge.s32.totalorder %s32, 2
    %s34 = scalar_select %p33, 0, %s32
    %s35 = ssub.s32 %s15, %s34
    %s36 = ssub.s32 %s16, %s30
    %s37 = sor.u32 %s35, %s36
    %s38 = ssub.s32 %s17, %s26
    %s39 = sor.u32 %s37, %s38
    %p40 = scmp.eq.s32.totalorder %s39, 0
    %s42 = sadd.s32 %s41, 1
    %s43 = scalar_select %p40, %s41, %s42
    %p46 = pneg %p40
    %p47 = scmp.eq.s32.totalorder %s8, 1
    %p48 = por %p46, %p47
    %p49 = scmp.ne.s32.totalorder %s41, %s44
    %p50 = scmp.eq.s32.totalorder %s8, 0
    %p51 = por %p49, %p50
    %p52 = scmp.ne.s32.totalorder %s41, %s44
    %p53 = scmp.eq.s32.totalorder %s13, 1
    %p54 = por %p52, %p53
    %p55 = scmp.ne.s32.totalorder %s44, %s45
    %p56 = scmp.eq.s32.totalorder %s13, 0
    %p57 = por %p55, %p56
    %p58 = scmp.ne.s32.totalorder %s44, %s45
    %p59 = scmp.eq.s32.totalorder %s14, 1
    %p60 = por %p58, %p59
    %p62 = scmp.ne.s32.totalorder %s45, %s61
    %p63 = scmp.eq.s32.totalorder %s14, 0
    %p64 = por %p62, %p63
    %s66 = sadd.s32 %s65, 1
    %p69 = scmp.eq.s32.totalorder %s8, 1
    %p70 = scmp.ne.s32.totalorder %s65, %s67
    %p71 = scmp.eq.s32.totalorder %s8, 0
    %p72 = por %p70, %p71
    %p73 = scmp.ne.s32.totalorder %s65, %s67
    %p74 = scmp.eq.s32.totalorder %s13, 1
    %p75 = por %p73, %p74
    %p76 = scmp.ne.s32.totalorder %s67, %s68
    %p77 = scmp.eq.s32.totalorder %s13, 0
    %p78 = por %p76, %p77
    %p79 = scmp.ne.s32.totalorder %s67, %s68
    %p80 = scmp.eq.s32.totalorder %s14, 1
    %p81 = por %p79, %p80
    %p83 = scmp.ne.s32.totalorder %s68, %s82
    %p84 = scmp.eq.s32.totalorder %s14, 0
    %p85 = por %p83, %p84
    %s86 = ssub.s32 %s15, %s34
    %s87 = ssub.s32 %s16, %s30
    %s88 = sor.u32 %s86, %s87
    %s89 = ssub.s32 %s17, %s26
    %s90 = sor.u32 %s88, %s89
    %p91 = scmp.eq.s32.totalorder %s90, 0
    %s93 = sadd.s32 %s92, 1
    %s94 = scalar_select %p91, %s92, %s93
    %p97 = pneg %p91
    %p98 = scmp.eq.s32.totalorder %s8, 1
    %p99 = por %p97, %p98
    %p100 = scmp.ne.s32.totalorder %s92, %s95
    %p101 = scmp.eq.s32.totalorder %s8, 0
    %p102 = por %p100, %p101
    %p103 = scmp.ne.s32.totalorder %s92, %s95
    %p104 = scmp.eq.s32.totalorder %s13, 1
    %p105 = por %p103, %p104
    %p106 = scmp.ne.s32.totalorder %s95, %s96
    %p107 = scmp.eq.s32.totalorder %s13, 0
    %p108 = por %p106, %p107
    %p109 = scmp.ne.s32.totalorder %s95, %s96
    %p110 = scmp.eq.s32.totalorder %s14, 1
    %p111 = por %p109, %p110
    %p113 = scmp.ne.s32.totalorder %s96, %s112
    %p114 = scmp.eq.s32.totalorder %s14, 0
    %p115 = por %p113, %p114
    %p116 = scmp.le.s32.totalorder 1, %s8
    %p117 = scmp.lt.s32.totalorder %s8, 3
    %p118 = pnand %p116, %p117
    %p119 = pneg %p118
    // Predicated region
    $region9: #{wave_down_all.1} parent=5 // pred_check
      _
    $region10: #{wave_down_all.1} parent=5 // pred_check_branch
      %121 = sbr.rel (%p118) target = $region12
    $region11: #{wave_down_all.1} parent=5 // pred_region
      %s122 = ssub.s32 %s8, 1
      // Predicated region
      $region13: #{wave_down_all.1} parent=11 // pred_check
        %p123 = pneg %p78
      $region14: #{wave_down_all.1} parent=11 // pred_check_branch
        %125 = sbr.rel (%p123) target = $region16
      $region15: #{wave_down_all.1} parent=11 // pred_region
        _
      $region16: #{wave_down_all.1} parent=11 // pred_fallthru
        _
    $region12: #{wave_down_all.1} parent=5 // pred_fallthru
      _
    %p126 = scmp.lt.s32.totalorder %s8, 2
    // Predicated region
    $region17: #{wave_down_all.1} parent=5 // pred_check
      %p127 = pneg %p126
    $region18: #{wave_down_all.1} parent=5 // pred_check_branch
      %129 = sbr.rel (%p127) target = $region20
    $region19: #{wave_down_all.1} parent=5 // pred_region
      // Predicated region
      $region21: #{wave_down_all.1} parent=19 // pred_check
        %p130 = pneg %p51
      $region22: #{wave_down_all.1} parent=19 // pred_check_branch
        %132 = sbr.rel (%p130) target = $region24
      $region23: #{wave_down_all.1} parent=19 // pred_region
        %s133 = smul.u32 4, %s16
        %p134 = scmp.lt.s32.totalorder %s15, 1
        %s135 = scalar_select %p134, %s15, 1
        %p136 = scmp.lt.s32.totalorder %s133, 3
        %s137 = scalar_select %p136, %s133, 3
        %p138 = scmp.lt.s32.totalorder %s17, 0
        %s139 = scalar_select %p138, %s17, 0
        %s140 = sadd.s32 %s139, %s137
        %s141 = smul.addr %s135, 4
        %s142 = sadd.s32 %s140, %s141
        %s143 = smul.addr %s142, 8
        %s144 = scalar_lea.vmem %s0, %s143
        %s145 = smul.u32 4, %s16
      $region24: #{wave_down_all.1} parent=19 // pred_fallthru
        _
    $region20: #{wave_down_all.1} parent=5 // pred_fallthru
      _
    %p146 = scmp.le.s32.totalorder 1, %s8
    %p147 = scmp.lt.s32.totalorder %s8, 3
    %p148 = pnand %p146, %p147
    %p149 = pneg %p148
    // Predicated region
    $region25: #{wave_down_all.1} parent=5 // pred_check
      _
    $region26: #{wave_down_all.1} parent=5 // pred_check_branch
      %151 = sbr.rel (%p148) target = $region28
    $region27: #{wave_down_all.1} parent=5 // pred_region
      %s152 = ssub.s32 %s8, 1
      %s153 = smul.u32 4, %s19
      %p154 = scmp.lt.s32.totalorder %s18, 1
      %s155 = scalar_select %p154, %s18, 1
      %p156 = scmp.lt.s32.totalorder %s153, 3
      %s157 = scalar_select %p156, %s153, 3
      %p158 = scmp.lt.s32.totalorder %s20, 0
      %s159 = scalar_select %p158, %s20, 0
      %s160 = sadd.s32 %s159, %s157
      %s161 = smul.addr %s155, 4
      %s162 = sadd.s32 %s160, %s161
      %s163 = smul.addr %s162, 8
      %s164 = scalar_lea.vmem %s0, %s163
      %p165 = pneg %p57
      %p166 = pneg %p54
      %p167 = pneg %p78
      %p168 = pneg %p75
      %p169 = pneg %p108
      %p170 = pneg %p105
      %s171 = smul.u32 4, %s19
      %p172 = scmp.lt.s32.totalorder %s18, 1
      %s173 = scalar_select %p172, %s18, 1
      %p174 = scmp.lt.s32.totalorder %s171, 3
      %s175 = scalar_select %p174, %s171, 3
      %p176 = scmp.lt.s32.totalorder %s20, 0
      %s177 = scalar_select %p176, %s20, 0
      %s178 = sadd.s32 %s177, %s175
      %s179 = smul.addr %s173, 16
      %s180 = sadd.s32 %s178, %s179
      %s181 = smul.addr %s180, 8
      %s182 = scalar_lea.vmem %s2, %s181
      %s183 = smul.u32 4, %s19
      %p184 = scmp.lt.s32.totalorder %s18, 1
      %s185 = scalar_select %p184, %s18, 1
      %p186 = scmp.lt.s32.totalorder %s183, 3
      %s187 = scalar_select %p186, %s183, 3
      %p188 = scmp.lt.s32.totalorder %s20, 0
      %s189 = scalar_select %p188, %s20, 0
      %s190 = sadd.s32 %s189, %s187
      %s191 = smul.addr %s185, 4
      %s192 = sadd.s32 %s190, %s191
      %s193 = smul.addr %s192, 8
      %s194 = scalar_lea.vmem %s0, %s193
      %s195 = smul.u32 4, %s19
      %s196 = smul.u32 4, %s19
      %p197 = scmp.lt.s32.totalorder %s18, 1
      %s198 = scalar_select %p197, %s18, 1
      %p199 = scmp.lt.s32.totalorder %s196, 3
      %s200 = scalar_select %p199, %s196, 3
      %p201 = scmp.lt.s32.totalorder %s20, 0
      %s202 = scalar_select %p201, %s20, 0
      %s203 = sadd.s32 %s202, %s200
      %s204 = smul.addr %s198, 16
      %s205 = sadd.s32 %s203, %s204
      %s206 = smul.addr %s205, 8
      %s207 = scalar_lea.vmem %s2, %s206
      %s208 = smul.u32 4, %s19
      %v209 = vld [vmem:[%s194] sm:$0xff]
      %v210 = vld [vmem:[%s194 + $0x8] sm:$0xff]
      %v211 = vld [vmem:[%s194 + $0x10] sm:$0xff]
      %v212 = vld [vmem:[%s194 + $0x18] sm:$0xff]
      %217 = vrot.lane.b32.xlu0 %v209, 112
      %v218 = vpop.permute.xlu0 %217
      %219 = vrot.lane.b32.xlu0 %v210, 112
      %v220 = vpop.permute.xlu0 %219
      %221 = vrot.lane.b32.xlu0 %v211, 112
      %v222 = vpop.permute.xlu0 %221
      %223 = vrot.lane.b32.xlu0 %v212, 112
      %v224 = vpop.permute.xlu0 %223
      %v229 = vadd.f32 %v209, %v218
      %v230 = vadd.f32 %v210, %v220
      %v231 = vadd.f32 %v211, %v222
      %v232 = vadd.f32 %v212, %v224
      %v233 = vmul.f32 %v229, 0.70710677
      %v234 = vmul.f32 %v230, 0.70710677
      %v235 = vmul.f32 %v231, 0.70710677
      %v236 = vmul.f32 %v232, 0.70710677
      %v237 = vsub.f32 %v209, %v218
      %v238 = vsub.f32 %v210, %v220
      %v239 = vsub.f32 %v211, %v222
      %v240 = vsub.f32 %v212, %v224
      %v241 = vmul.f32 %v237, 0.70710677
      %v242 = vmul.f32 %v238, 0.70710677
      %v243 = vmul.f32 %v239, 0.70710677
      %v244 = vmul.f32 %v240, 0.70710677
      %v245 = vld [vmem:[%s1] sm:$0xff]
      %v246 = vld [vmem:[%s1 + $0x8] sm:$0xff]
      %vm247 = vcmask 130048
      %v249 = vsel %vm247, %v233, 0
      %v252 = vsel %vm247, %v234, 0
      %v255 = vsel %vm247, %v235, 0
      %v258 = vsel %vm247, %v236, 0
      %260 = vmatprep.subr.mxu0 0.0
      %261 = vmatpush1.msra.mxu0 %v245
      %262 = vmatprep.subr.mxu0 0.0
      %263 = vmatpush1.msra.mxu0 %v246
      %264 = vmatprep.subr.mxu0 0.0
      %265 = vmatpush1.msra.mxu0 0.0
      %266 = vmatprep.subr.mxu0 0.0
      %267 = vmatpush1.msra.mxu0 0.0
      %268 = vmatprep.subr.mxu0 0.0
      %269 = vmatpush1.msra.mxu0 0.0
      %270 = vmatprep.subr.mxu0 0.0
      %271 = vmatpush1.msra.mxu0 0.0
      %272 = vmatprep.subr.mxu0 0.0
      %273 = vmatpush1.msra.mxu0 0.0
      %274 = vmatprep.subr.mxu0 0.0
      %275 = vmatpush1.msra.mxu0 0.0
      %276 = vmatprep.subr.mxu0 0.0
      %277 = vmatpush1.msra.mxu0 0.0
      %278 = vmatprep.subr.mxu0 0.0
      %279 = vmatpush1.msra.mxu0 0.0
      %280 = vmatprep.subr.mxu0 0.0
      %281 = vmatpush1.msra.mxu0 0.0
      %282 = vmatprep.subr.mxu0 0.0
      %283 = vmatpush1.msra.mxu0 0.0
      %284 = vmatprep.subr.mxu0 0.0
      %285 = vmatpush1.msra.mxu0 0.0
      %286 = vmatprep.subr.mxu0 0.0
      %287 = vmatpush1.msra.mxu0 0.0
      %288 = vmatprep.subr.mxu0 0.0
      %289 = vmatpush1.msra.mxu0 0.0
      %290 = vmatprep.subr.mxu0 0.0
      %291 = vmatpush1.msra.mxu0 0.0
      %292 = vmatprep.subr.mxu0 0.0
      %293 = vmatpush1.msra.mxu0 0.0
      %294 = vmatprep.subr.mxu0 0.0
      %295 = vmatpush1.msra.mxu0 0.0
      %296 = vmatprep.subr.mxu0 0.0
      %297 = vmatpush1.msra.mxu0 0.0
      %298 = vmatprep.subr.mxu0 0.0
      %299 = vmatpush1.msra.mxu0 0.0
      %300 = vmatprep.subr.mxu0 0.0
      %301 = vmatpush1.msra.mxu0 0.0
      %302 = vmatprep.subr.mxu0 0.0
      %303 = vmatpush1.msra.mxu0 0.0
      %304 = vmatprep.subr.mxu0 0.0
      %305 = vmatpush1.msra.mxu0 0.0
      %306 = vmatprep.subr.mxu0 0.0
      %307 = vmatpush1.msra.mxu0 0.0
      %308 = vmatprep.subr.mxu0 0.0
      %309 = vmatpush1.msra.mxu0 0.0
      %310 = vmatprep.subr.mxu0 0.0
      %311 = vmatpush1.msra.mxu0 0.0
      %312 = vmatprep.subr.mxu0 0.0
      %313 = vmatpush1.msra.mxu0 0.0
      %314 = vmatprep.subr.mxu0 0.0
      %315 = vmatpush1.msra.mxu0 0.0
      %316 = vmatprep.subr.mxu0 0.0
      %317 = vmatpush1.msra.mxu0 0.0
      %318 = vmatprep.subr.mxu0 0.0
      %319 = vmatpush1.msra.mxu0 0.0
      %320 = vmatprep.subr.mxu0 0.0
      %321 = vmatpush1.msra.mxu0 0.0
      %322 = vmatprep.subr.mxu0 0.0
      %323 = vmatpush1.msra.mxu0 0.0
      %324 = vmatprep.mubr.f32.mxu0 0.0
      %325 = vmatmul.mubr.f32.gmra.mrb[0].mxu0 %v249
      %v326 = vpop.f32.mrb[0].mxu0
      %v327 = vadd.f32 0.0, %v326
      %v328 = vpop.f32.mrb[0].mxu0
      %329 = vmatprep.mubr.f32.mxu0 0.0
      %330 = vmatmul.mubr.f32.gmra.mrb[0].mxu0 %v252
      %v331 = vpop.f32.mrb[0].mxu0
      %v332 = vadd.f32 0.0, %v331
      %v333 = vpop.f32.mrb[0].mxu0
      %334 = vmatprep.mubr.f32.mxu0 0.0
      %335 = vmatmul.mubr.f32.gmra.mrb[0].mxu0 %v255
      %v336 = vpop.f32.mrb[0].mxu0
      %v337 = vadd.f32 0.0, %v336
      %v338 = vpop.f32.mrb[0].mxu0
      %339 = vmatprep.mubr.f32.mxu0 0.0
      %340 = vmatmul.mubr.f32.gmra.mrb[0].mxu0 %v258
      %v341 = vpop.f32.mrb[0].mxu0
      %v342 = vadd.f32 0.0, %v341
      %v343 = vpop.f32.mrb[0].mxu0
      %344 = vdwg.mxu0
      %v346 = vsel %vm247, %v241, 0
      %v349 = vsel %vm247, %v242, 0
      %v352 = vsel %vm247, %v243, 0
      %v355 = vsel %vm247, %v244, 0
      %357 = vmatprep.subr.mxu0 0.0
      %358 = vmatpush1.msra.mxu0 %v245
      %359 = vmatprep.subr.mxu0 0.0
      %360 = vmatpush1.msra.mxu0 %v246
      %361 = vmatprep.subr.mxu0 0.0
      %362 = vmatpush1.msra.mxu0 0.0
      %363 = vmatprep.subr.mxu0 0.0
      %364 = vmatpush1.msra.mxu0 0.0
      %365 = vmatprep.subr.mxu0 0.0
      %366 = vmatpush1.msra.mxu0 0.0
      %367 = vmatprep.subr.mxu0 0.0
      %368 = vmatpush1.msra.mxu0 0.0
      %369 = vmatprep.subr.mxu0 0.0
      %370 = vmatpush1.msra.mxu0 0.0
      %371 = vmatprep.subr.mxu0 0.0
      %372 = vmatpush1.msra.mxu0 0.0
      %373 = vmatprep.subr.mxu0 0.0
      %374 = vmatpush1.msra.mxu0 0.0
      %375 = vmatprep.subr.mxu0 0.0
      %376 = vmatpush1.msra.mxu0 0.0
      %377 = vmatprep.subr.mxu0 0.0
      %378 = vmatpush1.msra.mxu0 0.0
      %379 = vmatprep.subr.mxu0 0.0
      %380 = vmatpush1.msra.mxu0 0.0
      %381 = vmatprep.subr.mxu0 0.0
      %382 = vmatpush1.msra.mxu0 0.0
      %383 = vmatprep.subr.mxu0 0.0
      %384 = vmatpush1.msra.mxu0 0.0
      %385 = vmatprep.subr.mxu0 0.0
      %386 = vmatpush1.msra.mxu0 0.0
      %387 = vmatprep.subr.mxu0 0.0
      %388 = vmatpush1.msra.mxu0 0.0
      %389 = vmatprep.subr.mxu0 0.0
      %390 = vmatpush1.msra.mxu0 0.0
      %391 = vmatprep.subr.mxu0 0.0
      %392 = vmatpush1.msra.mxu0 0.0
      %393 = vmatprep.subr.mxu0 0.0
      %394 = vmatpush1.msra.mxu0 0.0
      %395 = vmatprep.subr.mxu0 0.0
      %396 = vmatpush1.msra.mxu0 0.0
      %397 = vmatprep.subr.mxu0 0.0
      %398 = vmatpush1.msra.mxu0 0.0
      %399 = vmatprep.subr.mxu0 0.0
      %400 = vmatpush1.msra.mxu0 0.0
      %401 = vmatprep.subr.mxu0 0.0
      %402 = vmatpush1.msra.mxu0 0.0
      %403 = vmatprep.subr.mxu0 0.0
      %404 = vmatpush1.msra.mxu0 0.0
      %405 = vmatprep.subr.mxu0 0.0
      %406 = vmatpush1.msra.mxu0 0.0
      %407 = vmatprep.subr.mxu0 0.0
      %408 = vmatpush1.msra.mxu0 0.0
      %409 = vmatprep.subr.mxu0 0.0
      %410 = vmatpush1.msra.mxu0 0.0
      %411 = vmatprep.subr.mxu0 0.0
      %412 = vmatpush1.msra.mxu0 0.0
      %413 = vmatprep.subr.mxu0 0.0
      %414 = vmatpush1.msra.mxu0 0.0
      %415 = vmatprep.subr.mxu0 0.0
      %416 = vmatpush1.msra.mxu0 0.0
      %417 = vmatprep.subr.mxu0 0.0
      %418 = vmatpush1.msra.mxu0 0.0
      %419 = vmatprep.subr.mxu0 0.0
      %420 = vmatpush1.msra.mxu0 0.0
      %421 = vmatprep.mubr.f32.mxu0 0.0
      %422 = vmatmul.mubr.f32.gmra.mrb[0].mxu0 %v346
      %v423 = vpop.f32.mrb[0].mxu0
      %v424 = vadd.f32 0.0, %v423
      %v425 = vpop.f32.mrb[0].mxu0
      %426 = vmatprep.mubr.f32.mxu0 0.0
      %427 = vmatmul.mubr.f32.gmra.mrb[0].mxu0 %v349
      %v428 = vpop.f32.mrb[0].mxu0
      %v429 = vadd.f32 0.0, %v428
      %v430 = vpop.f32.mrb[0].mxu0
      %431 = vmatprep.mubr.f32.mxu0 0.0
      %432 = vmatmul.mubr.f32.gmra.mrb[0].mxu0 %v352
      %v433 = vpop.f32.mrb[0].mxu0
      %v434 = vadd.f32 0.0, %v433
      %v435 = vpop.f32.mrb[0].mxu0
      %436 = vmatprep.mubr.f32.mxu0 0.0
      %437 = vmatmul.mubr.f32.gmra.mrb[0].mxu0 %v355
      %v438 = vpop.f32.mrb[0].mxu0
      %v439 = vadd.f32 0.0, %v438
      %v440 = vpop.f32.mrb[0].mxu0
      %441 = vdwg.mxu0
      %vm442 = vcmask 64512
      %443 = vst.msk [vmem:[%s207] sm:$0xff] %vm442, %v424
      %444 = vst.msk [vmem:[%s207 + $0x8] sm:$0xff] %vm442, %v429
      %445 = vst.msk [vmem:[%s207 + $0x10] sm:$0xff] %vm442, %v434
      %446 = vst.msk [vmem:[%s207 + $0x18] sm:$0xff] %vm442, %v439
      %451 = vrot.lane.b32.xlu0 %v327, 120
      %v452 = vpop.permute.xlu0 %451
      %453 = vrot.lane.b32.xlu0 %v332, 120
      %v454 = vpop.permute.xlu0 %453
      %455 = vrot.lane.b32.xlu0 %v337, 120
      %v456 = vpop.permute.xlu0 %455
      %457 = vrot.lane.b32.xlu0 %v342, 120
      %v458 = vpop.permute.xlu0 %457
      %s463 = scalar_lea.vmem %s207, 32
      %464 = vst.msk [vmem:[%s463] sm:$0xff] %vm442, %v452
      %465 = vst.msk [vmem:[%s463 + $0x8] sm:$0xff] %vm442, %v454
      %466 = vst.msk [vmem:[%s463 + $0x10] sm:$0xff] %vm442, %v456
      %467 = vst.msk [vmem:[%s463 + $0x18] sm:$0xff] %vm442, %v458
      %472 = vrot.lane.b32.xlu0 %v424, 120
      %v473 = vpop.permute.xlu0 %472
      %474 = vrot.lane.b32.xlu0 %v429, 120
      %v475 = vpop.permute.xlu0 %474
      %476 = vrot.lane.b32.xlu0 %v434, 120
      %v477 = vpop.permute.xlu0 %476
      %478 = vrot.lane.b32.xlu0 %v439, 120
      %v479 = vpop.permute.xlu0 %478
      %s484 = scalar_lea.vmem %s207, 64
      %485 = vst.msk [vmem:[%s484] sm:$0xff] %vm442, %v473
      %486 = vst.msk [vmem:[%s484 + $0x8] sm:$0xff] %vm442, %v475
      %487 = vst.msk [vmem:[%s484 + $0x10] sm:$0xff] %vm442, %v477
      %488 = vst.msk [vmem:[%s484 + $0x18] sm:$0xff] %vm442, %v479
      %s489 = scalar_lea.vmem %s207, 96
      %490 = vst.msk [vmem:[%s489] sm:$0xff] %vm442, %v327
      %491 = vst.msk [vmem:[%s489 + $0x8] sm:$0xff] %vm442, %v332
      %492 = vst.msk [vmem:[%s489 + $0x10] sm:$0xff] %vm442, %v337
      %493 = vst.msk [vmem:[%s489 + $0x18] sm:$0xff] %vm442, %v342
      %s494 = smul.u32 4, %s19
      %p495 = scmp.lt.s32.totalorder %s18, 1
      %s496 = scalar_select %p495, %s18, 1
      %p497 = scmp.lt.s32.totalorder %s494, 3
      %s498 = scalar_select %p497, %s494, 3
      %p499 = scmp.lt.s32.totalorder %s20, 0
      %s500 = scalar_select %p499, %s20, 0
      %s501 = sadd.s32 %s500, %s498
      %s502 = smul.addr %s496, 16
      %s503 = sadd.s32 %s501, %s502
      %s504 = smul.addr %s503, 8
      %s505 = scalar_lea.vmem %s2, %s504
      // Predicated region
      $region29: #{wave_down_all.1} parent=27 // pred_check
        %p506 = pneg %p105
      $region30: #{wave_down_all.1} parent=27 // pred_check_branch
        %508 = sbr.rel (%p506) target = $region32
      $region31: #{wave_down_all.1} parent=27 // pred_region
        %s509 = smul.u32 4, %s19
      $region32: #{wave_down_all.1} parent=27 // pred_fallthru
        _
    $region28: #{wave_down_all.1} parent=5 // pred_fallthru
      _
    %p510 = scmp.le.s32.totalorder 2, %s8
    // Predicated region
    $region33: #{wave_down_all.1} parent=5 // pred_check
      %p511 = pneg %p510
    $region34: #{wave_down_all.1} parent=5 // pred_check_branch
      %513 = sbr.rel (%p511) target = $region36
    $region35: #{wave_down_all.1} parent=5 // pred_region
      %s514 = ssub.s32 %s8, 2
      // Predicated region
      $region37: #{wave_down_all.1} parent=35 // pred_check
        %p515 = pneg %p111
      $region38: #{wave_down_all.1} parent=35 // pred_check_branch
        %517 = sbr.rel (%p515) target = $region40
      $region39: #{wave_down_all.1} parent=35 // pred_region
        %s518 = smul.u32 4, %s22
        %p519 = scmp.lt.s32.totalorder %s21, 1
        %s520 = scalar_select %p519, %s21, 1
        %p521 = scmp.lt.s32.totalorder %s518, 3
        %s522 = scalar_select %p521, %s518, 3
        %p523 = scmp.lt.s32.totalorder %s23, 0
        %s524 = scalar_select %p523, %s23, 0
        %s525 = sadd.s32 %s524, %s522
        %s526 = smul.addr %s520, 16
        %s527 = sadd.s32 %s525, %s526
        %s528 = smul.addr %s527, 8
        %s529 = scalar_lea.vmem %s2, %s528
      $region40: #{wave_down_all.1} parent=35 // pred_fallthru
        _
    $region36: #{wave_down_all.1} parent=5 // pred_fallthru
      _
  $region6: #{wave_down_all.1} parent=0 // loop_footer
    %s12 = sadd.s32 1, %s8
  $region7: #{wave_down_all.1} parent=0 // loop_footer_branch
    %7 = sbr.rel target = $region3
  $region8: #{wave_down_all.1} parent=0 // loop_exit
    _

</llo_original>
